<compile_context>
chip_gen: v5e
topology: v5e:2x2
jax: 0.10.0
libtpu: 0.0.40
codegen_flags: <defaults>
</compile_context>

<pallas_src>
import functools

import jax
import jax.numpy as jnp
from jax.experimental import pallas as pl
from jax.experimental.pallas import tpu as pltpu


def _round_up(x, m):
    return (x + m - 1) // m * m


def _patch_embed_kernel(x_ref, w_ref, b_ref, g_ref, beta_ref, o_ref, *, inv_e, eps):
    # x_ref:    (tm, K)   patch rows, K = C*P
    # w_ref:    (K, E)    conv weight, VMEM-resident (constant block index)
    # b/g/beta: (1, E)
    # o_ref:    (tm, E)
    y = jnp.dot(x_ref[...], w_ref[...], preferred_element_type=jnp.float32)
    y = y + b_ref[...].astype(jnp.float32)

    # LayerNorm over the true E lanes; centered variance (PyTorch-accurate).
    mean = jnp.sum(y, axis=-1, keepdims=True) * inv_e
    yc = y - mean
    var = jnp.sum(yc * yc, axis=-1, keepdims=True) * inv_e
    y_hat = yc * jax.lax.rsqrt(var + eps)

    out = y_hat * g_ref[...].astype(jnp.float32) + beta_ref[...].astype(jnp.float32)
    o_ref[...] = out.astype(o_ref.dtype)


def _vmem_limit_bytes():
    # Generation-aware scoped-VMEM request: ~72% of physical, capped at 96 MiB.
    #   v5e/v6e (128 MiB physical) -> 92 MiB;  v7x (64 MiB physical) -> 46 MiB.
    try:
        cap = pltpu.get_tpu_info().vmem_capacity_bytes
    except Exception:
        cap = 64 * 1024 * 1024  # conservative fallback, safe on every generation
    return int(min(96 * 1024 * 1024, int(cap * 0.72)))


def _pick_m_tile(M, K, E, itemsize, vmem_limit):
    """Rows per grid step, accounting for everything resident in VMEM."""
    lanes_k = _round_up(K, 128)   # VMEM lane-pads the last dim to 128
    lanes_e = _round_up(E, 128)
    per_row = (2 * lanes_k * itemsize      # double-buffered input slab
               + 2 * lanes_e * itemsize    # double-buffered output slab
               + 4 * lanes_e * 4)          # f32 LN intermediates (y, y-mean, y_hat, scaled)
    fixed = (_round_up(K, 8) * lanes_e * itemsize   # resident weight block
             + 3 * 8 * lanes_e * 4)                 # bias / gamma / beta rows
    budget = max(per_row * 8, int(vmem_limit * 0.8) - fixed)
    cap = max(8, (budget // per_row) // 8 * 8)
    cap = min(cap, 4096)                   # past ~1K rows we're at the HBM roofline plateau
    if M <= cap:
        if M >= 16:
            # Split a single-tile problem so v7x's two TensorCores both get work
            # (one extra ~0.35us step on 1-TC v5e/v6e is negligible).
            return int(_round_up(pl.cdiv(M, 2), 8))
        return int(M)
    return int(cap)


@functools.partial(jax.jit, static_argnames=("patch_size",))
def patch_embed(x, weight, bias, gamma, beta, *, patch_size):
    """x: (B, C, T).  weight: (E, C, P).  bias/gamma/beta: (E,).

    Returns (B, L, E), L = T // P, matching the PyTorch Patch_Embed forward.
    """
    B, C, T = x.shape
    E, C_w, P = weight.shape
    assert C_w == C and P == patch_size and T % P == 0
    L = T // P
    M = B * L
    K = C * P

    # Patch rows (M, K).  For C == 1 this is a free view; otherwise one XLA
    # transpose pass over x (cheaper than the old padded-output write + slice).
    if C == 1:
        xr = x.reshape(M, K)
    else:
        xr = jnp.transpose(x.reshape(B, C, L, P), (0, 2, 1, 3)).reshape(M, K)

    # Conv1d(k=P, stride=P) weight (E, C, P) -> GEMM weight (K, E).
    w_k = weight.reshape(E, K).T
    b_row = bias.reshape(1, E)
    g_row = gamma.reshape(1, E)
    beta_row = beta.reshape(1, E)

    vmem_limit = _vmem_limit_bytes()
    tm = _pick_m_tile(M, K, E, x.dtype.itemsize, vmem_limit)
    n_m = pl.cdiv(M, tm)

    kernel = functools.partial(_patch_embed_kernel, inv_e=1.0 / float(E), eps=1e-5)

    cost = pl.CostEstimate(
        flops=2 * M * K * E + 8 * M * E,
        transcendentals=M,
        bytes_accessed=(M * K + K * E + M * E + 3 * E) * x.dtype.itemsize,
    )

    out = pl.pallas_call(
        kernel,
        out_shape=jax.ShapeDtypeStruct((M, E), x.dtype),
        grid_spec=pltpu.PrefetchScalarGridSpec(
            num_scalar_prefetch=0,
            grid=(n_m,),
            in_specs=[
                pl.BlockSpec((tm, K), lambda i: (i, 0)),   # patch rows
                pl.BlockSpec((K, E), lambda i: (0, 0)),    # resident weight
                pl.BlockSpec((1, E), lambda i: (0, 0)),    # bias
                pl.BlockSpec((1, E), lambda i: (0, 0)),    # gamma
                pl.BlockSpec((1, E), lambda i: (0, 0)),    # beta
            ],
            out_specs=pl.BlockSpec((tm, E), lambda i: (i, 0)),  # true-E store, no pad
        ),
        compiler_params=pltpu.CompilerParams(
            dimension_semantics=("parallel",),
            vmem_limit_bytes=vmem_limit,
        ),
        cost_estimate=cost,
    )(xr, w_k, b_row, g_row, beta_row)

    return out.reshape(B, L, E)


if __name__ == "__main__":
    # Module config (small, consistent with the forward pass)
    in_channel = 4
    embed_dim = 32
    patch_size = 4
    B, T = 2, 16                                      # -> L = 4 patches

    key = jax.random.PRNGKey(0)
    kx, kw, kb = jax.random.split(key, 3)

    # Deterministic synthetic parameters (shapes from nn.Conv1d / nn.LayerNorm)
    x = jax.random.normal(kx, (B, in_channel, T), dtype=jnp.float32)
    weight = 0.1 * jax.random.normal(kw, (embed_dim, in_channel, patch_size), dtype=jnp.float32)
    bias = 0.05 * jax.random.normal(kb, (embed_dim,), dtype=jnp.float32)
    gamma = jnp.ones((embed_dim,), dtype=jnp.float32)   # LayerNorm weight init
    beta = jnp.zeros((embed_dim,), dtype=jnp.float32)   # LayerNorm bias init

    out = patch_embed(x, weight, bias, gamma, beta, patch_size=patch_size)
    jax.block_until_ready(out)

    # Reference (plain JAX): Conv1d(k=stride=P) as patchify matmul + LayerNorm
    L = T // patch_size
    patches = x.reshape(B, in_channel, L, patch_size).transpose(0, 2, 1, 3).reshape(B * L, -1)
    y = patches @ weight.reshape(embed_dim, -1).T + bias
    mean = y.mean(-1, keepdims=True)
    var = ((y - mean) ** 2).mean(-1, keepdims=True)
    ref = ((y - mean) / jnp.sqrt(var + 1e-5) * gamma + beta).reshape(B, L, embed_dim)

    assert out.shape == (B, L, embed_dim)
    assert jnp.allclose(out, ref, atol=1e-4, rtol=1e-4)
    print("KERNEL_OK")
</pallas_src>

<mosaic_0001>
module attributes {stable_mosaic.version = 11 : i64} {
  func.func @_patch_embed_kernel(%arg0: i32, %arg1: memref<8x16xf32, #tpu.memory_space<vmem>>, %arg2: memref<16x32xf32, #tpu.memory_space<vmem>>, %arg3: memref<1x32xf32, #tpu.memory_space<vmem>>, %arg4: memref<1x32xf32, #tpu.memory_space<vmem>>, %arg5: memref<1x32xf32, #tpu.memory_space<vmem>>, %arg6: memref<8x32xf32, #tpu.memory_space<vmem>>) attributes {dimension_semantics = [#tpu.dimension_semantics<parallel>], iteration_bounds = array<i64: 1>, scalar_prefetch = 0 : i64, scratch_operands = 0 : i64, tpu.core_type = #tpu.core_type<tc>, window_params = [{transform_indices = @transform_0, window_bounds = array<i64: 8, 16>}, {pipeline_mode = #tpu.pipeline_mode<synchronous>, transform_indices = @transform_1, window_bounds = array<i64: 16, 32>}, {pipeline_mode = #tpu.pipeline_mode<synchronous>, transform_indices = @transform_2, window_bounds = array<i64: 1, 32>}, {pipeline_mode = #tpu.pipeline_mode<synchronous>, transform_indices = @transform_3, window_bounds = array<i64: 1, 32>}, {pipeline_mode = #tpu.pipeline_mode<synchronous>, transform_indices = @transform_4, window_bounds = array<i64: 1, 32>}, {transform_indices = @transform_5, window_bounds = array<i64: 8, 32>}]} {
    %c0 = arith.constant 0 : index
    %c0_0 = arith.constant 0 : index
    %0 = vector.load %arg1[%c0, %c0_0] : memref<8x16xf32, #tpu.memory_space<vmem>>, vector<8x16xf32>
    %c0_1 = arith.constant 0 : index
    %c0_2 = arith.constant 0 : index
    %1 = vector.load %arg2[%c0_1, %c0_2] : memref<16x32xf32, #tpu.memory_space<vmem>>, vector<16x32xf32>
    %cst = arith.constant dense<0.000000e+00> : vector<8x32xf32>
    %2 = tpu.matmul %0, %1, %cst {dimension_numbers = #tpu.dot_dimension_numbers<[1], [0], [0], [1], [0, 0, 1, 1], [], []>} : vector<8x16xf32>, vector<16x32xf32>, vector<8x32xf32> -> vector<8x32xf32>
    %c0_3 = arith.constant 0 : index
    %c0_4 = arith.constant 0 : index
    %3 = vector.load %arg3[%c0_3, %c0_4] : memref<1x32xf32, #tpu.memory_space<vmem>>, vector<1x32xf32>
    %4 = vector.broadcast %3 : vector<1x32xf32> to vector<8x32xf32>
    %5 = arith.addf %2, %4 : vector<8x32xf32>
    %cst_5 = arith.constant dense<0.000000e+00> : vector<8xf32>
    %6 = vector.multi_reduction <add>, %5, %cst_5 [1] : vector<8x32xf32> to vector<8xf32>
    %7 = vector.shape_cast %6 : vector<8xf32> to vector<8x1xf32>
    %cst_6 = arith.constant 3.125000e-02 : f32
    %8 = vector.broadcast %cst_6 : f32 to vector<8x1xf32>
    %9 = arith.mulf %7, %8 : vector<8x1xf32>
    %10 = vector.broadcast %9 : vector<8x1xf32> to vector<8x32xf32>
    %11 = arith.subf %5, %10 : vector<8x32xf32>
    %12 = arith.mulf %11, %11 : vector<8x32xf32>
    %cst_7 = arith.constant dense<0.000000e+00> : vector<8xf32>
    %13 = vector.multi_reduction <add>, %12, %cst_7 [1] : vector<8x32xf32> to vector<8xf32>
    %14 = vector.shape_cast %13 : vector<8xf32> to vector<8x1xf32>
    %cst_8 = arith.constant 3.125000e-02 : f32
    %15 = vector.broadcast %cst_8 : f32 to vector<8x1xf32>
    %16 = arith.mulf %14, %15 : vector<8x1xf32>
    %cst_9 = arith.constant 9.99999974E-6 : f32
    %17 = vector.broadcast %cst_9 : f32 to vector<8x1xf32>
    %18 = arith.addf %16, %17 : vector<8x1xf32>
    %19 = math.rsqrt %18 : vector<8x1xf32>
    %20 = vector.broadcast %19 : vector<8x1xf32> to vector<8x32xf32>
    %21 = arith.mulf %11, %20 : vector<8x32xf32>
    %c0_10 = arith.constant 0 : index
    %c0_11 = arith.constant 0 : index
    %22 = vector.load %arg4[%c0_10, %c0_11] : memref<1x32xf32, #tpu.memory_space<vmem>>, vector<1x32xf32>
    %23 = vector.broadcast %22 : vector<1x32xf32> to vector<8x32xf32>
    %24 = arith.mulf %21, %23 : vector<8x32xf32>
    %c0_12 = arith.constant 0 : index
    %c0_13 = arith.constant 0 : index
    %25 = vector.load %arg5[%c0_12, %c0_13] : memref<1x32xf32, #tpu.memory_space<vmem>>, vector<1x32xf32>
    %26 = vector.broadcast %25 : vector<1x32xf32> to vector<8x32xf32>
    %27 = arith.addf %24, %26 : vector<8x32xf32>
    %c0_14 = arith.constant 0 : index
    %c0_15 = arith.constant 0 : index
    %28 = vector.load %arg6[%c0_14, %c0_15] : memref<8x32xf32, #tpu.memory_space<vmem>>, vector<8x32xf32>
    tpu.vector_store %arg6[%c0_14, %c0_15], %27 {strides = array<i32>} : memref<8x32xf32, #tpu.memory_space<vmem>>, vector<8x32xf32>,
    return
  }
  func.func @transform_0(%arg0: i32) -> (i32, i32) {
    %c0_i32 = arith.constant 0 : i32
    %c0_i32_0 = arith.constant 0 : i32
    return %arg0, %c0_i32 : i32, i32
  }
  func.func @transform_1(%arg0: i32) -> (i32, i32) {
    %c0_i32 = arith.constant 0 : i32
    %c0_i32_0 = arith.constant 0 : i32
    %c0_i32_1 = arith.constant 0 : i32
    return %c0_i32, %c0_i32_0 : i32, i32
  }
  func.func @transform_2(%arg0: i32) -> (i32, i32) {
    %c0_i32 = arith.constant 0 : i32
    %c0_i32_0 = arith.constant 0 : i32
    %c0_i32_1 = arith.constant 0 : i32
    return %c0_i32, %c0_i32_0 : i32, i32
  }
  func.func @transform_3(%arg0: i32) -> (i32, i32) {
    %c0_i32 = arith.constant 0 : i32
    %c0_i32_0 = arith.constant 0 : i32
    %c0_i32_1 = arith.constant 0 : i32
    return %c0_i32, %c0_i32_0 : i32, i32
  }
  func.func @transform_4(%arg0: i32) -> (i32, i32) {
    %c0_i32 = arith.constant 0 : i32
    %c0_i32_0 = arith.constant 0 : i32
    %c0_i32_1 = arith.constant 0 : i32
    return %c0_i32, %c0_i32_0 : i32, i32
  }
  func.func @transform_5(%arg0: i32) -> (i32, i32) {
    %c0_i32 = arith.constant 0 : i32
    %c0_i32_0 = arith.constant 0 : i32
    return %arg0, %c0_i32 : i32, i32
  }
}

</mosaic_0001>

<llo_original>
// kernel: patch_embed.1
$region0: #{patch_embed.1}
  #allocation0 [shape = 'u32[]', space=smem, size = 0x4, offset = 0x4, fixed_abs, tag = 'smem constant byte address 0x4 - core index']
  #allocation1 [shape = 'u32[72,128]{1,0:T(1,128)}', space=vmem, size = 0x9000, scoped, tag = 'internal scratch']
  %s0 = inlined_call_operand.vmem [shape: f32[8,16], index: 0, kind: input, shape index: {}]
  %s1 = inlined_call_operand.vmem [shape: f32[16,32], index: 1, kind: input, shape index: {}]
  %s2 = inlined_call_operand.vmem [shape: f32[1,32], index: 2, kind: input, shape index: {}]
  %s3 = inlined_call_operand.vmem [shape: f32[1,32], index: 3, kind: input, shape index: {}]
  %s4 = inlined_call_operand.vmem [shape: f32[1,32], index: 4, kind: input, shape index: {}]
  %s5 = inlined_call_operand.hbm [shape: f32[8,32], index: 5, kind: output, shape index: {}]
  %s6 = sld [smem:[#allocation0]]
  $region30: #{patch_embed.1} parent=0
    _
  %s8 = ssub.s32 1, %s6
  %s9 = scalar_select 0, %s8, %s6
  $region1: #{patch_embed.1} parent=0
    #allocation2 [shape = 'u8[4096]{0}', space=vmem, size = 0x1000, scoped, tag = 'output window, operand 0, single buffered']
    #allocation3 [shape = 's32[1]{0}', space=sflag, size = 0x4, scoped, tag = 'scoped memory for patch_embed.1']
    %10 = vsyncpa [#allocation3], 0
    // Predicated region
    $region2: #{patch_embed.1} parent=1 // pred_check
      _
    $region3: #{patch_embed.1} parent=1 // pred_check_branch
      %12 = sbr.rel (0) target = $region5
    $region4: #{patch_embed.1} parent=1 // pred_region
      _
    $region5: #{patch_embed.1} parent=1 // pred_fallthru
      _
    // Predicated region
    $region6: #{patch_embed.1} parent=1 // pred_check
      _
    $region7: #{patch_embed.1} parent=1 // pred_check_branch
      %14 = sbr.rel (0) target = $region9
    $region8: #{patch_embed.1} parent=1 // pred_region
      _
    $region9: #{patch_embed.1} parent=1 // pred_fallthru
      _
    // Predicated region
    $region10: #{patch_embed.1} parent=1 // pred_check
      _
    $region11: #{patch_embed.1} parent=1 // pred_check_branch
      %16 = sbr.rel (0) target = $region13
    $region12: #{patch_embed.1} parent=1 // pred_region
      _
    $region13: #{patch_embed.1} parent=1 // pred_fallthru
      _
    // Predicated region
    $region14: #{patch_embed.1} parent=1 // pred_check
      _
    $region15: #{patch_embed.1} parent=1 // pred_check_branch
      %18 = sbr.rel (0) target = $region17
    $region16: #{patch_embed.1} parent=1 // pred_region
      _
    $region17: #{patch_embed.1} parent=1 // pred_fallthru
      _
    // Predicated region
    $region18: #{patch_embed.1} parent=1 // pred_check
      _
    $region19: #{patch_embed.1} parent=1 // pred_check_branch
      %20 = sbr.rel (0) target = $region21
    $region20: #{patch_embed.1} parent=1 // pred_region
      _
    $region21: #{patch_embed.1} parent=1 // pred_fallthru
      _
    %v21 = vld [vmem:[%s0] sm:$0xff]
    %v22 = vld [vmem:[%s1] sm:$0xff]
    %v23 = vld [vmem:[%s1 + $0x8] sm:$0xff]
    %v24 = vld [vmem:[%s2] sm:$0x1]
    %v26 = vperm.slane %v24, 0
    %vm28 = vcmask 130048
    %v30 = vsel %vm28, %v21, 0
    %32 = vmatpush.msra.mxu0 0.0
    %33 = vmatpush.msra.mxu0 0.0
    %34 = vmatpush.msra.mxu0 0.0
    %35 = vmatpush.msra.mxu0 0.0
    %36 = vmatpush.msra.mxu0 0.0
    %37 = vmatpush.msra.mxu0 0.0
    %38 = vmatpush.msra.mxu0 0.0
    %39 = vmatpush.msra.mxu0 0.0
    %40 = vmatpush.msra.mxu0 0.0
    %41 = vmatpush.msra.mxu0 0.0
    %42 = vmatpush.msra.mxu0 0.0
    %43 = vmatpush.msra.mxu0 0.0
    %44 = vmatpush.msra.mxu0 0.0
    %45 = vmatpush.msra.mxu0 0.0
    %46 = vmatpush.msra.mxu0 %v23
    %47 = vmatpush.msra.mxu0 %v22
    %48 = vmatmul.f32.gmra.mxu0 %v30
    %v49 = vpop.f32.mrf.mxu0
    %v50 = vadd.f32 %v26, %v49
    %51 = vdwg.mxu0
    %vm52 = vcmask 261120
    %v53 = vsel %vm52, %v50, 0.0
    %54 = vadd.xlane.f32.xlu0 %v53
    %v55 = vpop.xlane.xlu0 %54
    %v56 = vmul.f32 %v55, 0.03125
    %v57 = vsub.f32 %v50, %v56
    %v58 = vmul.f32 %v57, %v57
    %v59 = vsel %vm52, %v58, 0.0
    %60 = vadd.xlane.f32.xlu0 %v59
    %v61 = vpop.xlane.xlu0 %60
    %v62 = vmul.f32 %v61, 0.03125
    %v63 = vadd.f32 %v62, 1e-05
    %v64 = vrsqrt.pop %v63
    %v65 = vmul.f32 %v64, %v63
    %v66 = vmul.f32 %v65, %v64
    %v67 = vmul.f32 0.5, %v66
    %v68 = vsub.f32 1.5, %v67
    %v69 = vmul.f32 %v64, %v68
    %vm70 = vweird.f32 %v63
    %vm71 = vweird.f32 %v64
    %vm72 = vmor %vm70, %vm71
    %v73 = vsel %vm72, %v64, %v69
    %v74 = vmul.f32 %v57, %v73
    %v75 = vld [vmem:[%s3] sm:$0x1]
    %v77 = vperm.slane %v75, 0
    %v79 = vmul.f32 %v74, %v77
    %v80 = vld [vmem:[%s4] sm:$0x1]
    %v82 = vperm.slane %v80, 0
    %v84 = vadd.f32 %v79, %v82
    %85 = vst.msk [vmem:[#allocation2] sm:$0xff] %vm52, %v84
    // Predicated region
    $region22: #{patch_embed.1} parent=1 // pred_check
      _
    $region23: #{patch_embed.1} parent=1 // pred_check_branch
      %87 = sbr.rel (0) target = $region25
    $region24: #{patch_embed.1} parent=1 // pred_region
      %89 = vsyncadd [#allocation3], 0
      %s91 = sshll.u32 [#allocation2], 4
      %s92 = int_to_ptr.vmem [resolvable:$true] %s91
      %s93 = sshll.u32 %s5, 4
      %s94 = int_to_ptr.hbm [resolvable:$true] %s93
      %96 = dma.vmem_to_hbm [thread:$0]  %s92, 128, %s94, [#allocation3]
    $region25: #{patch_embed.1} parent=1 // pred_fallthru
      _
    // Predicated region
    $region26: #{patch_embed.1} parent=1 // pred_check
      _
    $region27: #{patch_embed.1} parent=1 // pred_check_branch
      %98 = sbr.rel (0) target = $region29
    $region28: #{patch_embed.1} parent=1 // pred_region
      %100 = dma.done [#allocation3], 128
    $region29: #{patch_embed.1} parent=1 // pred_fallthru
      _
    %101 = vsyncpa [#allocation3], 1

</llo_original>
